<compile_context>
chip_gen: v7x
topology: tpu7x:2x2x1
jax: 0.10.0
libtpu: 0.0.40
codegen_flags: <defaults>
</compile_context>

<pallas_src>
import functools

import jax
import jax.numpy as jnp
from jax.experimental import pallas as pl
from jax.experimental.pallas import tpu as pltpu

_ENABLE_TOP_P = False  # matches the reference module; top-p branch is dead code.


def _sample_kernel(hidden_ref, w_ref, t_ref, g_ref, out_ref,
                   gmax_ref, gidx_ref, smax_ref, sidx_ref,
                   *, num_samples, vocab_size, tv):
    """One vocab chunk: logits chunk + online argmax + online Gumbel-max.

    hidden_ref : [B, H]   bf16 selected hidden states (resident across the grid)
    w_ref      : [H, TV]  bf16 lm_head chunk for this grid step
    t_ref      : [B, 1]   f32 sampling temperatures (resident)
    g_ref      : [num_samples, B, TV] f32 Gumbel noise chunk
    out_ref    : [B, num_samples] int32 next-token ids (written at last step)
    scratch    : gmax/gidx [B,1], smax/sidx [B,num_samples] running reductions
    """
    j = pl.program_id(0)

    @pl.when(j == 0)
    def _():
        gmax_ref[...] = jnp.full(gmax_ref.shape, -jnp.inf, jnp.float32)
        gidx_ref[...] = jnp.zeros(gidx_ref.shape, jnp.int32)
        smax_ref[...] = jnp.full(smax_ref.shape, -jnp.inf, jnp.float32)
        sidx_ref[...] = jnp.zeros(sidx_ref.shape, jnp.int32)

    # logits chunk on the MXU: bf16 inputs, f32 accumulate.  [B, TV]
    logits = jnp.dot(hidden_ref[...], w_ref[...],
                     preferred_element_type=jnp.float32)

    # Global vocab indices of this chunk.
    idx = jax.lax.broadcasted_iota(jnp.int32, logits.shape, 1) + j * tv
    sentinel = jnp.int32(vocab_size)

    # ---- greedy path: online first-index argmax over vocab chunks ----
    cmax = jnp.max(logits, axis=-1, keepdims=True)                       # [B,1]
    carg = jnp.min(jnp.where(logits == cmax, idx, sentinel),
                   axis=-1, keepdims=True)                               # [B,1]
    better = cmax > gmax_ref[...]          # strict > keeps first index on ties
    gidx_ref[...] = jnp.where(better, carg, gidx_ref[...])
    gmax_ref[...] = jnp.maximum(cmax, gmax_ref[...])

    # ---- sampled path: Gumbel-max on temperature-scaled logits ----
    t = t_ref[...]                                                        # [B,1]
    inv_t = 1.0 / jnp.where(t != 0.0, t, 1.0)                             # [B,1]
    scaled = logits * inv_t                                               # [B,TV]
    for s in range(num_samples):                  # small static unroll
        perturbed = scaled + g_ref[s]                                     # [B,TV]
        pmax = jnp.max(perturbed, axis=-1, keepdims=True)                 # [B,1]
        parg = jnp.min(jnp.where(perturbed == pmax, idx, sentinel),
                       axis=-1, keepdims=True)                            # [B,1]
        sbetter = pmax > smax_ref[:, s:s + 1]
        sidx_ref[:, s:s + 1] = jnp.where(sbetter, parg, sidx_ref[:, s:s + 1])
        smax_ref[:, s:s + 1] = jnp.maximum(pmax, smax_ref[:, s:s + 1])

    # ---- finalize: next_token_ids = where(t != 0, sampled, argmax) ----
    @pl.when(j == pl.num_programs(0) - 1)
    def _():
        greedy = t_ref[...] == 0.0                                        # [B,1]
        out_ref[...] = jnp.where(greedy, gidx_ref[...], sidx_ref[...])


def model_wrapper_forward(token_ids, position_ids, input_lens, t, p,
                          num_samples, kv_caches, params, *, seed=0,
                          vocab_tile=None):
    """JAX/Pallas equivalent of ModelWrapper.forward with a synthetic model.

    Synthetic model: hidden = tok_emb[token_ids] + pos_emb[position_ids];
    compute_logits: logits = hidden_selected @ lm_head.

    NOTE: `seed` must be advanced by the caller per decode step / request so
    successive multinomial draws are independent.
    """
    del p  # _ENABLE_TOP_P is False -> top-p branch is never taken.
    tok_emb, pos_emb, lm_head = params
    B, S = token_ids.shape
    H, V = lm_head.shape

    # TODO(synk): attn_metadata / slot_mapping KV-cache bookkeeping depends on
    # aphrodite's forward context and real KV caches; kv_caches are empty here.
    del kv_caches

    # ---- glue: embed ONLY the last token of each sequence (plain JAX) ----
    # logits_indices = b*S + input_lens - 1; for this position-wise synthetic
    # model that is exactly the last-token embedding.
    # TODO(synk): a real transformer needs the full-sequence forward here.
    rows = jnp.arange(B, dtype=jnp.int32)
    last = input_lens.astype(jnp.int32) - 1
    last_tok = token_ids[rows, last]
    last_pos = position_ids[rows, last]
    selected = (tok_emb[last_tok] + pos_emb[last_pos]).astype(jnp.bfloat16)   # [B,H]

    w_bf16 = lm_head.astype(jnp.bfloat16)                                     # [H,V]
    t2d = t.astype(jnp.float32).reshape(B, 1)

    # Gumbel-max noise (== torch.multinomial(softmax(logits), replacement=True)).
    gumbel = jax.random.gumbel(jax.random.PRNGKey(seed),
                               (num_samples, B, V), dtype=jnp.float32)

    # Vocab tile: multiple of 128; pick smaller on v7x (64 MiB VMEM), larger on
    # v6e/v5e.  Default keeps the double-buffered bf16 weight block modest.
    if vocab_tile is None:
        vocab_tile = min(V, 1024)
    assert V % vocab_tile == 0 and vocab_tile % 128 == 0
    num_chunks = V // vocab_tile

    # VMEM budget: double-buffered weight + noise chunks, resident hidden/t/out,
    # plus slack for [B, TV] f32 temporaries.
    vmem_est = (2 * (H * vocab_tile * 2 + num_samples * B * vocab_tile * 4)
                + B * H * 2 + 4 * B * vocab_tile * 4 + (1 << 20))
    vmem_limit = int(min(max(vmem_est, 32 * 1024 * 1024), 64 * 1024 * 1024))

    out = pl.pallas_call(
        functools.partial(_sample_kernel, num_samples=num_samples,
                          vocab_size=V, tv=vocab_tile),
        out_shape=jax.ShapeDtypeStruct((B, num_samples), jnp.int32),
        grid=(num_chunks,),
        in_specs=[
            pl.BlockSpec((B, H), lambda j: (0, 0)),                 # hidden (resident)
            pl.BlockSpec((H, vocab_tile), lambda j: (0, j)),        # lm_head chunk
            pl.BlockSpec((B, 1), lambda j: (0, 0)),                 # temperatures
            pl.BlockSpec((num_samples, B, vocab_tile),
                         lambda j: (0, 0, j)),                      # gumbel chunk
        ],
        out_specs=pl.BlockSpec((B, num_samples), lambda j: (0, 0)),
        scratch_shapes=[
            pltpu.VMEM((B, 1), jnp.float32),             # running greedy max
            pltpu.VMEM((B, 1), jnp.int32),               # running greedy argmax
            pltpu.VMEM((B, num_samples), jnp.float32),   # running sampled max
            pltpu.VMEM((B, num_samples), jnp.int32),     # running sampled argmax
        ],
        compiler_params=pltpu.CompilerParams(
            dimension_semantics=("arbitrary",),
            vmem_limit_bytes=vmem_limit),
        cost_estimate=pl.CostEstimate(
            flops=2 * B * H * V,
            transcendentals=0,
            bytes_accessed=(H * V * 2 + num_samples * B * V * 4
                            + B * H * 2 + B * num_samples * 4)),
    )(selected, w_bf16, t2d, gumbel)

    if num_samples == 1:
        out = out[:, 0]   # squeeze(dim=-1)
    return out


if __name__ == "__main__":
    # Small, deterministic shapes; TV=128 so the grid has 4 steps and the online
    # reductions across vocab chunks are actually exercised.
    B, S, H, V = 8, 8, 128, 512
    TV = 128

    key = jax.random.PRNGKey(0)
    k_tok, k_emb, k_pos, k_lm, k_len, k_t = jax.random.split(key, 6)

    tok_emb = 0.02 * jax.random.normal(k_emb, (V, H), dtype=jnp.float32)
    pos_emb = 0.02 * jax.random.normal(k_pos, (S, H), dtype=jnp.float32)
    lm_head = 0.02 * jax.random.normal(k_lm, (H, V), dtype=jnp.float32)
    params = (tok_emb, pos_emb, lm_head)

    token_ids = jax.random.randint(k_tok, (B, S), 0, V, dtype=jnp.int32)
    position_ids = jnp.broadcast_to(jnp.arange(S, dtype=jnp.int32), (B, S))
    input_lens = jax.random.randint(k_len, (B,), 1, S + 1, dtype=jnp.int32)
    t = jnp.where(jnp.arange(B) % 2 == 0, 0.0,
                  jax.random.uniform(k_t, (B,), minval=0.5, maxval=1.5)
                  ).astype(jnp.float32)            # mix greedy (t=0) and sampled rows
    p = jnp.ones((B,), dtype=jnp.float32)          # unused (_ENABLE_TOP_P = False)
    kv_caches = [(jnp.zeros((0,), jnp.float32), jnp.zeros((0,), jnp.float32))]

    def reference(num_samples, seed):
        rows = jnp.arange(B, dtype=jnp.int32)
        last = input_lens.astype(jnp.int32) - 1
        sel = (tok_emb[token_ids[rows, last]]
               + pos_emb[position_ids[rows, last]]).astype(jnp.bfloat16)
        logits = jnp.dot(sel, lm_head.astype(jnp.bfloat16),
                         preferred_element_type=jnp.float32)              # [B, V]
        greedy = jnp.argmax(logits, axis=-1).astype(jnp.int32)            # [B]
        inv_t = 1.0 / jnp.where(t != 0.0, t, 1.0)
        scaled = logits * inv_t[:, None]
        g = jax.random.gumbel(jax.random.PRNGKey(seed),
                              (num_samples, B, V), dtype=jnp.float32)
        sampled = jnp.argmax(scaled[None] + g, axis=-1).astype(jnp.int32)  # [ns, B]
        next_ids = jnp.where(t[None, :] != 0.0, sampled, greedy[None, :])  # [ns, B]
        return next_ids.T                                                  # [B, ns]

    # num_samples == 1 (squeezed like the torch module)
    out1 = model_wrapper_forward(token_ids, position_ids, input_lens, t, p,
                                 1, kv_caches, params, seed=0, vocab_tile=TV)
    out1 = jax.block_until_ready(out1)
    exp1 = reference(1, 0)[:, 0]
    assert out1.shape == (B,) and out1.dtype == jnp.int32
    assert bool(jnp.all((out1 >= 0) & (out1 < V)))
    assert bool(jnp.array_equal(out1, exp1))

    # num_samples == 2 (no squeeze)
    out2 = model_wrapper_forward(token_ids, position_ids, input_lens, t, p,
                                 2, kv_caches, params, seed=1, vocab_tile=TV)
    out2 = jax.block_until_ready(out2)
    exp2 = reference(2, 1)
    assert out2.shape == (B, 2) and out2.dtype == jnp.int32
    assert bool(jnp.all((out2 >= 0) & (out2 < V)))
    assert bool(jnp.array_equal(out2, exp2))

    print("KERNEL_OK")
</pallas_src>

<mosaic_0001>
module attributes {stable_mosaic.version = 11 : i64} {
  func.func @_sample_kernel(%arg0: i32, %arg1: memref<8x128xbf16, #tpu.memory_space<vmem>>, %arg2: memref<128x128xbf16, #tpu.memory_space<vmem>>, %arg3: memref<8x1xf32, #tpu.memory_space<vmem>>, %arg4: memref<1x8x128xf32, #tpu.memory_space<vmem>>, %arg5: memref<8x1xi32, #tpu.memory_space<vmem>>, %arg6: memref<8x1xf32, #tpu.memory_space<vmem>>, %arg7: memref<8x1xi32, #tpu.memory_space<vmem>>, %arg8: memref<8x1xf32, #tpu.memory_space<vmem>>, %arg9: memref<8x1xi32, #tpu.memory_space<vmem>>) attributes {dimension_semantics = [#tpu.dimension_semantics<arbitrary>], iteration_bounds = array<i64: 4>, scalar_prefetch = 0 : i64, scratch_operands = 4 : i64, tpu.core_type = #tpu.core_type<tc>, window_params = [{pipeline_mode = #tpu.pipeline_mode<synchronous>, transform_indices = @transform_0, window_bounds = array<i64: 8, 128>}, {transform_indices = @transform_1, window_bounds = array<i64: 128, 128>}, {pipeline_mode = #tpu.pipeline_mode<synchronous>, transform_indices = @transform_2, window_bounds = array<i64: 8, 1>}, {transform_indices = @transform_3, window_bounds = array<i64: 1, 8, 128>}, {pipeline_mode = #tpu.pipeline_mode<synchronous>, transform_indices = @transform_4, window_bounds = array<i64: 8, 1>}]} {
    %c0_i32 = arith.constant 0 : i32
    %0 = arith.cmpi eq, %arg0, %c0_i32 : i32
    %1 = arith.extui %0 : i1 to i32
    %c0_i32_0 = arith.constant 0 : i32
    %2 = arith.cmpi ne, %1, %c0_i32_0 : i32
    scf.if %2 {
      %cst_38 = arith.constant 0xFF800000 : f32
      %57 = vector.broadcast %cst_38 : f32 to vector<8x1xf32>
      %c0_39 = arith.constant 0 : index
      %c0_40 = arith.constant 0 : index
      %58 = vector.load %arg6[%c0_39, %c0_40] : memref<8x1xf32, #tpu.memory_space<vmem>>, vector<8x1xf32>
      tpu.vector_store %arg6[%c0_39, %c0_40], %57 {strides = array<i32>} : memref<8x1xf32, #tpu.memory_space<vmem>>, vector<8x1xf32>,
      %c0_i32_41 = arith.constant 0 : i32
      %59 = vector.broadcast %c0_i32_41 : i32 to vector<8x1xi32>
      %c0_42 = arith.constant 0 : index
      %c0_43 = arith.constant 0 : index
      %60 = vector.load %arg7[%c0_42, %c0_43] : memref<8x1xi32, #tpu.memory_space<vmem>>, vector<8x1xi32>
      tpu.vector_store %arg7[%c0_42, %c0_43], %59 {strides = array<i32>} : memref<8x1xi32, #tpu.memory_space<vmem>>, vector<8x1xi32>,
      %cst_44 = arith.constant 0xFF800000 : f32
      %61 = vector.broadcast %cst_44 : f32 to vector<8x1xf32>
      %c0_45 = arith.constant 0 : index
      %c0_46 = arith.constant 0 : index
      %62 = vector.load %arg8[%c0_45, %c0_46] : memref<8x1xf32, #tpu.memory_space<vmem>>, vector<8x1xf32>
      tpu.vector_store %arg8[%c0_45, %c0_46], %61 {strides = array<i32>} : memref<8x1xf32, #tpu.memory_space<vmem>>, vector<8x1xf32>,
      %c0_i32_47 = arith.constant 0 : i32
      %63 = vector.broadcast %c0_i32_47 : i32 to vector<8x1xi32>
      %c0_48 = arith.constant 0 : index
      %c0_49 = arith.constant 0 : index
      %64 = vector.load %arg9[%c0_48, %c0_49] : memref<8x1xi32, #tpu.memory_space<vmem>>, vector<8x1xi32>
      tpu.vector_store %arg9[%c0_48, %c0_49], %63 {strides = array<i32>} : memref<8x1xi32, #tpu.memory_space<vmem>>, vector<8x1xi32>,
    } else {
    }
    %c0 = arith.constant 0 : index
    %c0_1 = arith.constant 0 : index
    %3 = vector.load %arg1[%c0, %c0_1] : memref<8x128xbf16, #tpu.memory_space<vmem>>, vector<8x128xbf16>
    %c0_2 = arith.constant 0 : index
    %c0_3 = arith.constant 0 : index
    %4 = vector.load %arg2[%c0_2, %c0_3] : memref<128x128xbf16, #tpu.memory_space<vmem>>, vector<128x128xbf16>
    %cst = arith.constant dense<0.000000e+00> : vector<8x128xf32>
    %5 = tpu.matmul %3, %4, %cst {dimension_numbers = #tpu.dot_dimension_numbers<[1], [0], [0], [1], [0, 0, 1, 1], [], []>} : vector<8x128xbf16>, vector<128x128xbf16>, vector<8x128xf32> -> vector<8x128xf32>
    %6 = tpu.iota {dimensions = array<i32: 1>} : vector<8x128xi32>
    %c128_i32 = arith.constant 128 : i32
    %7 = arith.muli %arg0, %c128_i32 : i32
    %8 = vector.broadcast %7 : i32 to vector<8x128xi32>
    %9 = arith.addi %6, %8 : vector<8x128xi32>
    %cst_4 = arith.constant dense<0xFF800000> : vector<8xf32>
    %10 = vector.multi_reduction <maximumf>, %5, %cst_4 [1] : vector<8x128xf32> to vector<8xf32>
    %11 = vector.shape_cast %10 : vector<8xf32> to vector<8x1xf32>
    %12 = vector.broadcast %11 : vector<8x1xf32> to vector<8x128xf32>
    %13 = arith.cmpf oeq, %5, %12 : vector<8x128xf32>
    %c512_i32 = arith.constant 512 : i32
    %14 = vector.broadcast %c512_i32 : i32 to vector<8x128xi32>
    %15 = arith.select %13, %9, %14 : vector<8x128xi1>, vector<8x128xi32>
    %cst_5 = arith.constant dense<2147483647> : vector<8xi32>
    %16 = vector.multi_reduction <minsi>, %15, %cst_5 [1] : vector<8x128xi32> to vector<8xi32>
    %17 = vector.shape_cast %16 : vector<8xi32> to vector<8x1xi32>
    %c0_6 = arith.constant 0 : index
    %c0_7 = arith.constant 0 : index
    %18 = vector.load %arg6[%c0_6, %c0_7] : memref<8x1xf32, #tpu.memory_space<vmem>>, vector<8x1xf32>
    %19 = arith.cmpf ogt, %11, %18 : vector<8x1xf32>
    %c0_8 = arith.constant 0 : index
    %c0_9 = arith.constant 0 : index
    %20 = vector.load %arg7[%c0_8, %c0_9] : memref<8x1xi32, #tpu.memory_space<vmem>>, vector<8x1xi32>
    %21 = arith.select %19, %17, %20 : vector<8x1xi1>, vector<8x1xi32>
    %c0_10 = arith.constant 0 : index
    %c0_11 = arith.constant 0 : index
    %22 = vector.load %arg7[%c0_10, %c0_11] : memref<8x1xi32, #tpu.memory_space<vmem>>, vector<8x1xi32>
    tpu.vector_store %arg7[%c0_10, %c0_11], %21 {strides = array<i32>} : memref<8x1xi32, #tpu.memory_space<vmem>>, vector<8x1xi32>,
    %c0_12 = arith.constant 0 : index
    %c0_13 = arith.constant 0 : index
    %23 = vector.load %arg6[%c0_12, %c0_13] : memref<8x1xf32, #tpu.memory_space<vmem>>, vector<8x1xf32>
    %24 = arith.maximumf %11, %23 : vector<8x1xf32>
    %c0_14 = arith.constant 0 : index
    %c0_15 = arith.constant 0 : index
    %25 = vector.load %arg6[%c0_14, %c0_15] : memref<8x1xf32, #tpu.memory_space<vmem>>, vector<8x1xf32>
    tpu.vector_store %arg6[%c0_14, %c0_15], %24 {strides = array<i32>} : memref<8x1xf32, #tpu.memory_space<vmem>>, vector<8x1xf32>,
    %c0_16 = arith.constant 0 : index
    %c0_17 = arith.constant 0 : index
    %26 = vector.load %arg3[%c0_16, %c0_17] : memref<8x1xf32, #tpu.memory_space<vmem>>, vector<8x1xf32>
    %cst_18 = arith.constant 0.000000e+00 : f32
    %27 = vector.broadcast %cst_18 : f32 to vector<8x1xf32>
    %28 = arith.cmpf one, %26, %27 : vector<8x1xf32>
    %cst_19 = arith.constant 1.000000e+00 : f32
    %29 = vector.broadcast %cst_19 : f32 to vector<8x1xf32>
    %30 = arith.select %28, %26, %29 : vector<8x1xi1>, vector<8x1xf32>
    %cst_20 = arith.constant 1.000000e+00 : f32
    %31 = vector.broadcast %cst_20 : f32 to vector<8x1xf32>
    %32 = arith.divf %31, %30 : vector<8x1xf32>
    %33 = vector.broadcast %32 : vector<8x1xf32> to vector<8x128xf32>
    %34 = arith.mulf %5, %33 : vector<8x128xf32>
    %c0_21 = arith.constant 0 : index
    %c0_22 = arith.constant 0 : index
    %c0_23 = arith.constant 0 : index
    %35 = vector.load %arg4[%c0_21, %c0_22, %c0_23] : memref<1x8x128xf32, #tpu.memory_space<vmem>>, vector<1x8x128xf32>
    %36 = vector.shape_cast %35 : vector<1x8x128xf32> to vector<8x128xf32>
    %37 = arith.addf %34, %36 : vector<8x128xf32>
    %cst_24 = arith.constant dense<0xFF800000> : vector<8xf32>
    %38 = vector.multi_reduction <maximumf>, %37, %cst_24 [1] : vector<8x128xf32> to vector<8xf32>
    %39 = vector.shape_cast %38 : vector<8xf32> to vector<8x1xf32>
    %40 = vector.broadcast %39 : vector<8x1xf32> to vector<8x128xf32>
    %41 = arith.cmpf oeq, %37, %40 : vector<8x128xf32>
    %c512_i32_25 = arith.constant 512 : i32
    %42 = vector.broadcast %c512_i32_25 : i32 to vector<8x128xi32>
    %43 = arith.select %41, %9, %42 : vector<8x128xi1>, vector<8x128xi32>
    %cst_26 = arith.constant dense<2147483647> : vector<8xi32>
    %44 = vector.multi_reduction <minsi>, %43, %cst_26 [1] : vector<8x128xi32> to vector<8xi32>
    %45 = vector.shape_cast %44 : vector<8xi32> to vector<8x1xi32>
    %c0_27 = arith.constant 0 : index
    %c0_28 = arith.constant 0 : index
    %46 = vector.load %arg8[%c0_27, %c0_28] : memref<8x1xf32, #tpu.memory_space<vmem>>, vector<8x1xf32>
    %47 = arith.cmpf ogt, %39, %46 : vector<8x1xf32>
    %c0_29 = arith.constant 0 : index
    %c0_30 = arith.constant 0 : index
    %48 = vector.load %arg9[%c0_29, %c0_30] : memref<8x1xi32, #tpu.memory_space<vmem>>, vector<8x1xi32>
    %49 = arith.select %47, %45, %48 : vector<8x1xi1>, vector<8x1xi32>
    %c0_31 = arith.constant 0 : index
    %c0_32 = arith.constant 0 : index
    %50 = vector.load %arg9[%c0_31, %c0_32] : memref<8x1xi32, #tpu.memory_space<vmem>>, vector<8x1xi32>
    tpu.vector_store %arg9[%c0_31, %c0_32], %49 {strides = array<i32>} : memref<8x1xi32, #tpu.memory_space<vmem>>, vector<8x1xi32>,
    %c0_33 = arith.constant 0 : index
    %c0_34 = arith.constant 0 : index
    %51 = vector.load %arg8[%c0_33, %c0_34] : memref<8x1xf32, #tpu.memory_space<vmem>>, vector<8x1xf32>
    %52 = arith.maximumf %39, %51 : vector<8x1xf32>
    %c0_35 = arith.constant 0 : index
    %c0_36 = arith.constant 0 : index
    %53 = vector.load %arg8[%c0_35, %c0_36] : memref<8x1xf32, #tpu.memory_space<vmem>>, vector<8x1xf32>
    tpu.vector_store %arg8[%c0_35, %c0_36], %52 {strides = array<i32>} : memref<8x1xf32, #tpu.memory_space<vmem>>, vector<8x1xf32>,
    %c3_i32 = arith.constant 3 : i32
    %54 = arith.cmpi eq, %arg0, %c3_i32 : i32
    %55 = arith.extui %54 : i1 to i32
    %c0_i32_37 = arith.constant 0 : i32
    %56 = arith.cmpi ne, %55, %c0_i32_37 : i32
    scf.if %56 {
      %c0_38 = arith.constant 0 : index
      %c0_39 = arith.constant 0 : index
      %57 = vector.load %arg3[%c0_38, %c0_39] : memref<8x1xf32, #tpu.memory_space<vmem>>, vector<8x1xf32>
      %cst_40 = arith.constant 0.000000e+00 : f32
      %58 = vector.broadcast %cst_40 : f32 to vector<8x1xf32>
      %59 = arith.cmpf oeq, %57, %58 : vector<8x1xf32>
      %c0_41 = arith.constant 0 : index
      %c0_42 = arith.constant 0 : index
      %60 = vector.load %arg7[%c0_41, %c0_42] : memref<8x1xi32, #tpu.memory_space<vmem>>, vector<8x1xi32>
      %c0_43 = arith.constant 0 : index
      %c0_44 = arith.constant 0 : index
      %61 = vector.load %arg9[%c0_43, %c0_44] : memref<8x1xi32, #tpu.memory_space<vmem>>, vector<8x1xi32>
      %62 = arith.select %59, %60, %61 : vector<8x1xi1>, vector<8x1xi32>
      %c0_45 = arith.constant 0 : index
      %c0_46 = arith.constant 0 : index
      %63 = vector.load %arg5[%c0_45, %c0_46] : memref<8x1xi32, #tpu.memory_space<vmem>>, vector<8x1xi32>
      tpu.vector_store %arg5[%c0_45, %c0_46], %62 {strides = array<i32>} : memref<8x1xi32, #tpu.memory_space<vmem>>, vector<8x1xi32>,
    } else {
    }
    return
  }
  func.func @transform_0(%arg0: i32) -> (i32, i32) {
    %c0_i32 = arith.constant 0 : i32
    %c0_i32_0 = arith.constant 0 : i32
    %c0_i32_1 = arith.constant 0 : i32
    return %c0_i32, %c0_i32_0 : i32, i32
  }
  func.func @transform_1(%arg0: i32) -> (i32, i32) {
    %c0_i32 = arith.constant 0 : i32
    %c0_i32_0 = arith.constant 0 : i32
    return %c0_i32, %arg0 : i32, i32
  }
  func.func @transform_2(%arg0: i32) -> (i32, i32) {
    %c0_i32 = arith.constant 0 : i32
    %c0_i32_0 = arith.constant 0 : i32
    %c0_i32_1 = arith.constant 0 : i32
    return %c0_i32, %c0_i32_0 : i32, i32
  }
  func.func @transform_3(%arg0: i32) -> (i32, i32, i32) {
    %c0_i32 = arith.constant 0 : i32
    %c0_i32_0 = arith.constant 0 : i32
    %c0_i32_1 = arith.constant 0 : i32
    return %c0_i32, %c0_i32_0, %arg0 : i32, i32, i32
  }
  func.func @transform_4(%arg0: i32) -> (i32, i32) {
    %c0_i32 = arith.constant 0 : i32
    %c0_i32_0 = arith.constant 0 : i32
    %c0_i32_1 = arith.constant 0 : i32
    return %c0_i32, %c0_i32_0 : i32, i32
  }
}

</mosaic_0001>

<llo_original>
// kernel: tpu_custom_call.1
$region0: #{tpu_custom_call.1}
  #allocation0 [shape = 'u32[]', space=smem, size = 0x4, offset = 0x4, fixed_abs, tag = 'smem constant byte address 0x4 - core index']
  #allocation1 [shape = 'u32[144,128]{1,0:T(1,128)}', space=vmem, size = 0x12000, scoped, tag = 'internal scratch']
  #allocation2 [shape = 'f32[8,1]{1,0:T(8,128)}', space=vmem, size = 0x1000, scoped, tag = 'scratch operand']
  #allocation3 [shape = 's32[8,1]{1,0:T(8,128)}', space=vmem, size = 0x1000, scoped, tag = 'scratch operand']
  #allocation4 [shape = 'f32[8,1]{1,0:T(8,128)}', space=vmem, size = 0x1000, scoped, tag = 'scratch operand']
  #allocation5 [shape = 's32[8,1]{1,0:T(8,128)}', space=vmem, size = 0x1000, scoped, tag = 'scratch operand']
  %s0 = inlined_call_operand.vmem [shape: bf16[8,128], index: 0, kind: input, shape index: {}]
  %s1 = inlined_call_operand.hbm [shape: bf16[128,512], index: 1, kind: input, shape index: {}]
  %s2 = inlined_call_operand.vmem [shape: f32[8,1], index: 2, kind: input, shape index: {}]
  %s3 = inlined_call_operand.hbm [shape: f32[1,8,512], index: 3, kind: input, shape index: {}]
  %s4 = inlined_call_operand.vmem [shape: s32[8,1], index: 4, kind: output, shape index: {}]
  %s5 = sld [smem:[#allocation0]]
  $region65: #{tpu_custom_call.1} parent=0
    _
  %s7 = ssub.s32 1, %s5
  %s8 = scalar_select 0, %s7, %s5
  $region1: #{tpu_custom_call.1} parent=0
    #allocation6 [shape = 'u8[65536]{0}', space=vmem, size = 0x10000, scoped, tag = 'input window, operand 1']
    #allocation7 [shape = 's32[2]{0}', space=sflag, size = 0x8, scoped, tag = 'scoped memory for tpu_custom_call.1']
    #allocation8 [shape = 'u8[8192]{0}', space=vmem, size = 0x2000, scoped, tag = 'input window, operand 3']
    #allocation9 [shape = 's32[2]{0}', space=sflag, size = 0x8, scoped, tag = 'scoped memory for tpu_custom_call.1']
    %9 = vsyncpa [#allocation7], 0
    %s10 = scalar_lea.sflag [#allocation7], 1
    %11 = vsyncpa %s10, 0
    %12 = vsyncpa [#allocation9], 0
    %s13 = scalar_lea.sflag [#allocation9], 1
    %14 = vsyncpa %s13, 0
    loop: start=0, step=1, limit=6
    $region2: #{tpu_custom_call.1} parent=1 // loop_pre_header
      _
    $region3: #{tpu_custom_call.1} parent=1 // loop_header
      %s16 = sphi 0, %s20
      %p17 = scmp.ge.s32.totalorder %s16, 6
      %s24 = sphi 0, %s24
      %s26 = sphi 0, %s24
      %s27 = sphi 0, %s26
      %s41 = sphi 0, %s27
      %s47 = sphi 0, %s49
      %s50 = sphi 0, %s47
      %s51 = sphi 0, %s50
      %s67 = sphi 0, %s51
      %s71 = sphi 0, %s71
      %s73 = sphi 0, %s71
      %s74 = sphi 0, %s73
      %s88 = sphi 0, %s74
      %s94 = sphi 0, %s96
      %s97 = sphi 0, %s94
      %s98 = sphi 0, %s97
      %s114 = sphi 0, %s98
      %s118 = sphi 0, %s118
      %s120 = sphi 0, %s118
      %s121 = sphi 0, %s120
      %s135 = sphi 0, %s121
    $region4: #{tpu_custom_call.1} parent=1 // loop_header_branch
      %19 = sbr.rel (%p17) target = $region8
    $region5: #{tpu_custom_call.1} parent=1 // loop_body
      %s21 = ssub.s32 %s16, 1
      %s22 = ssub.s32 %s16, 2
      %s23 = sadd.s32 %s16, 1
      %s25 = sadd.s32 %s24, 1
      %p28 = scmp.eq.s32.totalorder %s16, 3
      %p29 = scmp.ne.s32.totalorder %s24, %s26
      %p30 = scmp.eq.s32.totalorder %s16, 0
      %p31 = por %p29, %p30
      %p32 = scmp.ne.s32.totalorder %s24, %s26
      %p33 = scmp.eq.s32.totalorder %s21, 3
      %p34 = por %p32, %p33
      %p35 = scmp.ne.s32.totalorder %s26, %s27
      %p36 = scmp.eq.s32.totalorder %s21, 0
      %p37 = por %p35, %p36
      %p38 = scmp.ne.s32.totalorder %s26, %s27
      %p39 = scmp.eq.s32.totalorder %s22, 3
      %p40 = por %p38, %p39
      %p42 = scmp.ne.s32.totalorder %s27, %s41
      %p43 = scmp.eq.s32.totalorder %s22, 0
      %p44 = por %p42, %p43
      %s45 = ssub.s32 %s16, %s23
      %p46 = scmp.eq.s32.totalorder %s45, 0
      %s48 = sadd.s32 %s47, 1
      %s49 = scalar_select %p46, %s47, %s48
      %p52 = pneg %p46
      %p53 = scmp.eq.s32.totalorder %s16, 3
      %p54 = por %p52, %p53
      %p55 = scmp.ne.s32.totalorder %s47, %s50
      %p56 = scmp.eq.s32.totalorder %s16, 0
      %p57 = por %p55, %p56
      %p58 = scmp.ne.s32.totalorder %s47, %s50
      %p59 = scmp.eq.s32.totalorder %s21, 3
      %p60 = por %p58, %p59
      %p61 = scmp.ne.s32.totalorder %s50, %s51
      %p62 = scmp.eq.s32.totalorder %s21, 0
      %p63 = por %p61, %p62
      %p64 = scmp.ne.s32.totalorder %s50, %s51
      %p65 = scmp.eq.s32.totalorder %s22, 3
      %p66 = por %p64, %p65
      %p68 = scmp.ne.s32.totalorder %s51, %s67
      %p69 = scmp.eq.s32.totalorder %s22, 0
      %p70 = por %p68, %p69
      %s72 = sadd.s32 %s71, 1
      %p75 = scmp.eq.s32.totalorder %s16, 3
      %p76 = scmp.ne.s32.totalorder %s71, %s73
      %p77 = scmp.eq.s32.totalorder %s16, 0
      %p78 = por %p76, %p77
      %p79 = scmp.ne.s32.totalorder %s71, %s73
      %p80 = scmp.eq.s32.totalorder %s21, 3
      %p81 = por %p79, %p80
      %p82 = scmp.ne.s32.totalorder %s73, %s74
      %p83 = scmp.eq.s32.totalorder %s21, 0
      %p84 = por %p82, %p83
      %p85 = scmp.ne.s32.totalorder %s73, %s74
      %p86 = scmp.eq.s32.totalorder %s22, 3
      %p87 = por %p85, %p86
      %p89 = scmp.ne.s32.totalorder %s74, %s88
      %p90 = scmp.eq.s32.totalorder %s22, 0
      %p91 = por %p89, %p90
      %s92 = ssub.s32 %s16, %s23
      %p93 = scmp.eq.s32.totalorder %s92, 0
      %s95 = sadd.s32 %s94, 1
      %s96 = scalar_select %p93, %s94, %s95
      %p99 = pneg %p93
      %p100 = scmp.eq.s32.totalorder %s16, 3
      %p101 = por %p99, %p100
      %p102 = scmp.ne.s32.totalorder %s94, %s97
      %p103 = scmp.eq.s32.totalorder %s16, 0
      %p104 = por %p102, %p103
      %p105 = scmp.ne.s32.totalorder %s94, %s97
      %p106 = scmp.eq.s32.totalorder %s21, 3
      %p107 = por %p105, %p106
      %p108 = scmp.ne.s32.totalorder %s97, %s98
      %p109 = scmp.eq.s32.totalorder %s21, 0
      %p110 = por %p108, %p109
      %p111 = scmp.ne.s32.totalorder %s97, %s98
      %p112 = scmp.eq.s32.totalorder %s22, 3
      %p113 = por %p111, %p112
      %p115 = scmp.ne.s32.totalorder %s98, %s114
      %p116 = scmp.eq.s32.totalorder %s22, 0
      %p117 = por %p115, %p116
      %s119 = sadd.s32 %s118, 1
      %p122 = scmp.eq.s32.totalorder %s16, 3
      %p123 = scmp.ne.s32.totalorder %s118, %s120
      %p124 = scmp.eq.s32.totalorder %s16, 0
      %p125 = por %p123, %p124
      %p126 = scmp.ne.s32.totalorder %s118, %s120
      %p127 = scmp.eq.s32.totalorder %s21, 3
      %p128 = por %p126, %p127
      %p129 = scmp.ne.s32.totalorder %s120, %s121
      %p130 = scmp.eq.s32.totalorder %s21, 0
      %p131 = por %p129, %p130
      %p132 = scmp.ne.s32.totalorder %s120, %s121
      %p133 = scmp.eq.s32.totalorder %s22, 3
      %p134 = por %p132, %p133
      %p136 = scmp.ne.s32.totalorder %s121, %s135
      %p137 = scmp.eq.s32.totalorder %s22, 0
      %p138 = por %p136, %p137
      %p139 = scmp.le.s32.totalorder 1, %s16
      %p140 = scmp.lt.s32.totalorder %s16, 5
      %p141 = pnand %p139, %p140
      %p142 = pneg %p141
      // Predicated region
      $region9: #{tpu_custom_call.1} parent=5 // pred_check
        _
      $region10: #{tpu_custom_call.1} parent=5 // pred_check_branch
        %144 = sbr.rel (%p141) target = $region12
      $region11: #{tpu_custom_call.1} parent=5 // pred_region
        %s145 = ssub.s32 %s16, 1
        // Predicated region
        $region13: #{tpu_custom_call.1} parent=11 // pred_check
          %p146 = pneg %p37
        $region14: #{tpu_custom_call.1} parent=11 // pred_check_branch
          %148 = sbr.rel (%p146) target = $region16
        $region15: #{tpu_custom_call.1} parent=11 // pred_region
          _
        $region16: #{tpu_custom_call.1} parent=11 // pred_fallthru
          _
        // Predicated region
        $region17: #{tpu_custom_call.1} parent=11 // pred_check
          %p149 = pneg %p84
        $region18: #{tpu_custom_call.1} parent=11 // pred_check_branch
          %151 = sbr.rel (%p149) target = $region20
        $region19: #{tpu_custom_call.1} parent=11 // pred_region
          _
        $region20: #{tpu_custom_call.1} parent=11 // pred_fallthru
          _
      $region12: #{tpu_custom_call.1} parent=5 // pred_fallthru
        _
      %p152 = scmp.lt.s32.totalorder %s16, 4
      // Predicated region
      $region21: #{tpu_custom_call.1} parent=5 // pred_check
        %p153 = pneg %p152
      $region22: #{tpu_custom_call.1} parent=5 // pred_check_branch
        %155 = sbr.rel (%p153) target = $region24
      $region23: #{tpu_custom_call.1} parent=5 // pred_region
        // Predicated region
        $region25: #{tpu_custom_call.1} parent=23 // pred_check
          %p156 = pneg %p57
        $region26: #{tpu_custom_call.1} parent=23 // pred_check_branch
          %158 = sbr.rel (%p156) target = $region28
        $region27: #{tpu_custom_call.1} parent=23 // pred_region
          %s159 = sand.u32 %s47, 1
          %s160 = scalar_lea.sflag [#allocation7], %s159
          %s161 = sand.u32 %s47, 1
          %s162 = smul.addr %s161, 64
          %s163 = scalar_lea.vmem [#allocation6], %s162
          %s165 = ssub.s32 1024, 1024
          %166 = vsyncadd %s160, %s165
          %s167 = smul.addr %s16, 64
          %s168 = scalar_lea.hbm %s1, %s167
          %s169 = sshll.u32 %s163, 4
          %s170 = int_to_ptr.vmem [resolvable:$true] %s169
          %175 = dma.hbm_to_vmem [thread:$0]  %s168, 1024, %s170, %s160, 256, 64, 4
        $region28: #{tpu_custom_call.1} parent=23 // pred_fallthru
          _
        // Predicated region
        $region29: #{tpu_custom_call.1} parent=23 // pred_check
          %p176 = pneg %p104
        $region30: #{tpu_custom_call.1} parent=23 // pred_check_branch
          %178 = sbr.rel (%p176) target = $region32
        $region31: #{tpu_custom_call.1} parent=23 // pred_region
          %s179 = sand.u32 %s94, 1
          %s180 = scalar_lea.sflag [#allocation9], %s179
          %s181 = sand.u32 %s94, 1
          %s182 = smul.addr %s181, 8
          %s183 = scalar_lea.vmem [#allocation8], %s182
          %s185 = ssub.s32 128, 128
          %186 = vsyncadd %s180, %s185
          %s187 = smul.addr %s16, 128
          %s188 = scalar_lea.hbm %s3, %s187
          %s190 = sshll.u32 %s183, 4
          %s191 = int_to_ptr.vmem [resolvable:$true] %s190
          %193 = dma.hbm_to_vmem [thread:$0]  %s188, 128, %s191, %s180
        $region32: #{tpu_custom_call.1} parent=23 // pred_fallthru
          _
      $region24: #{tpu_custom_call.1} parent=5 // pred_fallthru
        _
      %p194 = scmp.le.s32.totalorder 1, %s16
      %p195 = scmp.lt.s32.totalorder %s16, 5
      %p196 = pnand %p194, %p195
      %p197 = pneg %p196
      // Predicated region
      $region33: #{tpu_custom_call.1} parent=5 // pred_check
        _
      $region34: #{tpu_custom_call.1} parent=5 // pred_check_branch
        %199 = sbr.rel (%p196) target = $region36
      $region35: #{tpu_custom_call.1} parent=5 // pred_region
        %s200 = ssub.s32 %s16, 1
        %s201 = sand.u32 %s50, 1
        %s202 = scalar_lea.sflag [#allocation7], %s201
        %s203 = sand.u32 %s50, 1
        %s204 = smul.addr %s203, 64
        %s205 = scalar_lea.vmem [#allocation6], %s204
        // Predicated region
        $region37: #{tpu_custom_call.1} parent=35 // pred_check
          %p206 = pneg %p63
        $region38: #{tpu_custom_call.1} parent=35 // pred_check_branch
          %208 = sbr.rel (%p206) target = $region40
        $region39: #{tpu_custom_call.1} parent=35 // pred_region
          %209 = dma.done %s202, 1024
        $region40: #{tpu_custom_call.1} parent=35 // pred_fallthru
          _
        %s210 = sand.u32 %s97, 1
        %s211 = scalar_lea.sflag [#allocation9], %s210
        %s212 = sand.u32 %s97, 1
        %s213 = smul.addr %s212, 8
        %s214 = scalar_lea.vmem [#allocation8], %s213
        // Predicated region
        $region41: #{tpu_custom_call.1} parent=35 // pred_check
          %p215 = pneg %p110
        $region42: #{tpu_custom_call.1} parent=35 // pred_check_branch
          %217 = sbr.rel (%p215) target = $region44
        $region43: #{tpu_custom_call.1} parent=35 // pred_region
          %218 = dma.done %s211, 128
        $region44: #{tpu_custom_call.1} parent=35 // pred_fallthru
          _
        %p219 = pneg %p37
        %p220 = pneg %p34
        %s221 = sand.u32 %s50, 1
        %s222 = scalar_lea.sflag [#allocation7], %s221
        %s223 = sand.u32 %s50, 1
        %s224 = smul.addr %s223, 64
        %s225 = scalar_lea.vmem [#allocation6], %s224
        %p226 = pneg %p63
        %p227 = pneg %p60
        %p228 = pneg %p84
        %p229 = pneg %p81
        %s230 = sand.u32 %s97, 1
        %s231 = scalar_lea.sflag [#allocation9], %s230
        %s232 = sand.u32 %s97, 1
        %s233 = smul.addr %s232, 8
        %s234 = scalar_lea.vmem [#allocation8], %s233
        %p235 = pneg %p110
        %p236 = pneg %p107
        %p237 = pneg %p131
        %p238 = pneg %p128
        %p240 = scmp.eq.s32.totalorder %s21, 0
        // Predicated region
        $region45: #{tpu_custom_call.1} parent=35 // pred_check
          %p241 = pneg %p240
        $region46: #{tpu_custom_call.1} parent=35 // pred_check_branch
          %243 = sbr.rel (%p241) target = $region48
        $region47: #{tpu_custom_call.1} parent=35 // pred_region
          %vm244 = vcmask 7168
          %245 = vst.msk [vmem:[#allocation2] sm:$0xff] %vm244, -inf
          %246 = vst.msk [vmem:[#allocation3] sm:$0xff] %vm244, 0
          %247 = vst.msk [vmem:[#allocation4] sm:$0xff] %vm244, -inf
          %248 = vst.msk [vmem:[#allocation5] sm:$0xff] %vm244, 0
        $region48: #{tpu_custom_call.1} parent=35 // pred_fallthru
          _
        %v249 = vld [vmem:[%s0] sm:$0xf]
        %v250 = vld [vmem:[%s205] sm:$0xf]
        %v251 = vld [vmem:[%s205 + $0x4] sm:$0xf]
        %v252 = vld [vmem:[%s205 + $0x8] sm:$0xf]
        %v253 = vld [vmem:[%s205 + $0xc] sm:$0xf]
        %v254 = vld [vmem:[%s205 + $0x10] sm:$0xf]
        %v255 = vld [vmem:[%s205 + $0x14] sm:$0xf]
        %v256 = vld [vmem:[%s205 + $0x18] sm:$0xf]
        %v257 = vld [vmem:[%s205 + $0x1c] sm:$0xf]
        %v258 = vld [vmem:[%s205 + $0x20] sm:$0xf]
        %v259 = vld [vmem:[%s205 + $0x24] sm:$0xf]
        %v260 = vld [vmem:[%s205 + $0x28] sm:$0xf]
        %v261 = vld [vmem:[%s205 + $0x2c] sm:$0xf]
        %v262 = vld [vmem:[%s205 + $0x30] sm:$0xf]
        %v263 = vld [vmem:[%s205 + $0x34] sm:$0xf]
        %v264 = vld [vmem:[%s205 + $0x38] sm:$0xf]
        %v265 = vld [vmem:[%s205 + $0x3c] sm:$0xf]
        %v282 = vunpack.c.l.b16 %v250
        %v283 = vunpack.c.l.b16 %v251
        %v284 = vunpack.c.l.b16 %v252
        %v285 = vunpack.c.l.b16 %v253
        %v286 = vunpack.c.l.b16 %v254
        %v287 = vunpack.c.l.b16 %v255
        %v288 = vunpack.c.l.b16 %v256
        %v289 = vunpack.c.l.b16 %v257
        %v290 = vunpack.c.l.b16 %v258
        %v291 = vunpack.c.l.b16 %v259
        %v292 = vunpack.c.l.b16 %v260
        %v293 = vunpack.c.l.b16 %v261
        %v294 = vunpack.c.l.b16 %v262
        %v295 = vunpack.c.l.b16 %v263
        %v296 = vunpack.c.l.b16 %v264
        %v297 = vunpack.c.l.b16 %v265
        %v298 = vpack.c.b16 %v283, %v282
        %v299 = vpack.c.b16 %v285, %v284
        %v300 = vpack.c.b16 %v287, %v286
        %v301 = vpack.c.b16 %v289, %v288
        %v302 = vpack.c.b16 %v291, %v290
        %v303 = vpack.c.b16 %v293, %v292
        %v304 = vpack.c.b16 %v295, %v294
        %v305 = vpack.c.b16 %v297, %v296
        %314 = vmatprep.subr.bf16.mxu0 0
        %315 = vmatpush1.bf16.msra.mxu0 %v298
        %316 = vmatprep.subr.bf16.mxu0 0
        %317 = vmatpush1.bf16.msra.mxu0 %v299
        %318 = vmatprep.subr.bf16.mxu0 0
        %319 = vmatpush1.bf16.msra.mxu0 %v300
        %320 = vmatprep.subr.bf16.mxu0 0
        %321 = vmatpush1.bf16.msra.mxu0 %v301
        %322 = vmatprep.subr.bf16.mxu0 0
        %323 = vmatpush1.bf16.msra.mxu0 %v302
        %324 = vmatprep.subr.bf16.mxu0 0
        %325 = vmatpush1.bf16.msra.mxu0 %v303
        %326 = vmatprep.subr.bf16.mxu0 0
        %327 = vmatpush1.bf16.msra.mxu0 %v304
        %328 = vmatprep.subr.bf16.mxu0 0
        %329 = vmatpush1.bf16.msra.mxu0 %v305
        %330 = vmatprep.subr.bf16.mxu0 0
        %331 = vmatpush1.bf16.msra.mxu0 0
        %332 = vmatprep.subr.bf16.mxu0 0
        %333 = vmatpush1.bf16.msra.mxu0 0
        %334 = vmatprep.subr.bf16.mxu0 0
        %335 = vmatpush1.bf16.msra.mxu0 0
        %336 = vmatprep.subr.bf16.mxu0 0
        %337 = vmatpush1.bf16.msra.mxu0 0
        %338 = vmatprep.subr.bf16.mxu0 0
        %339 = vmatpush1.bf16.msra.mxu0 0
        %340 = vmatprep.subr.bf16.mxu0 0
        %341 = vmatpush1.bf16.msra.mxu0 0
        %342 = vmatprep.subr.bf16.mxu0 0
        %343 = vmatpush1.bf16.msra.mxu0 0
        %344 = vmatprep.subr.bf16.mxu0 0
        %345 = vmatpush1.bf16.msra.mxu0 0
        %346 = vmatprep.mubr.bf16.mxu0 0
        %347 = vmatmul.mubr.bf16.gmra.mrb[0].mxu0 %v249
        %v348 = vpop.f32.mrb[0].mxu0
        %v349 = vadd.f32 0.0, %v348
        %v350 = vpop.f32.mrb[0].mxu0
        %v351 = vpop.f32.mrb[0].mxu0
        %v352 = vpop.f32.mrb[0].mxu0
        %353 = vdwg.mxu0
        %v354 = vlaneseq
        %v355 = vand.u32 %v354, 127
        %s356 = smul.u32 %s21, 128
        %v357 = vstv %s356
        %v358 = vadd.s32 %v355, %v357
        %359 = vmax.xlane.f32.xlu0 %v349
        %v360 = vpop.xlane.xlu0 %359
        %vm361 = vcmp.eq.f32.partialorder %v349, %v360
        %v362 = vsel %vm361, %v358, 512
        %v363 = vand.u32 %v362, 65535
        %v364 = vshra.s32 %v362, 16
        %v365 = vcvt.s32.f32 %v363
        %v366 = vcvt.s32.f32 %v364
        %367 = vmin.xlane.f32.xlu0 %v366
        %v368 = vpop.xlane.xlu0 %367
        %vm369 = vcmp.eq.f32.partialorder %v366, %v368
        %v370 = vsel %vm369, %v365, inf
        %371 = vmin.xlane.f32.xlu0 %v370
        %v372 = vpop.xlane.xlu0 %371
        %v373 = vcvt.f32.s32 %v372
        %v374 = vcvt.f32.s32 %v368
        %v375 = vshll.u32 %v374, 16
        %v376 = vadd.s32 %v375, %v373
        %v377 = vld [vmem:[#allocation2] sm:$0xff]
        %vm378 = vcmp.gt.f32.partialorder %v360, %v377
        %v379 = vld [vmem:[#allocation3] sm:$0xff]
        %v380 = vsel %vm378, %v376, %v379
        %vm381 = vcmask 7168
        %382 = vst.msk [vmem:[#allocation3] sm:$0xff] %vm381, %v380
        %v383 = vld [vmem:[#allocation2] sm:$0xff]
        %v384 = vmax.f32 %v360, %v383
        %385 = vst.msk [vmem:[#allocation2] sm:$0xff] %vm381, %v384
        %v386 = vld [vmem:[%s2] sm:$0xff]
        %vm387 = vcmp.ne.f32.partialorder %v386, 0.0
        %v388 = vsel %vm387, %v386, 1.0
        %v389 = vrcp.pop %v388
        %v390 = vmul.f32 1.0, %v389
        %392 = vset.pattern.permute.xlu0 0
        %393 = vperm.xlu0 %392, %v390
        %v394 = vpop.permute.xlu0 %393
        %v396 = vmul.f32 %v349, %v394
        %v397 = vld [vmem:[%s214] sm:$0xff]
        %v398 = vadd.f32 %v396, %v397
        %399 = vmax.xlane.f32.xlu0 %v398
        %v400 = vpop.xlane.xlu0 %399
        %vm401 = vcmp.eq.f32.partialorder %v398, %v400
        %v402 = vsel %vm401, %v358, 512
        %v403 = vand.u32 %v402, 65535
        %v404 = vshra.s32 %v402, 16
        %v405 = vcvt.s32.f32 %v403
        %v406 = vcvt.s32.f32 %v404
        %407 = vmin.xlane.f32.xlu0 %v406
        %v408 = vpop.xlane.xlu0 %407
        %vm409 = vcmp.eq.f32.partialorder %v406, %v408
        %v410 = vsel %vm409, %v405, inf
        %411 = vmin.xlane.f32.xlu0 %v410
        %v412 = vpop.xlane.xlu0 %411
        %v413 = vcvt.f32.s32 %v412
        %v414 = vcvt.f32.s32 %v408
        %v415 = vshll.u32 %v414, 16
        %v416 = vadd.s32 %v415, %v413
        %v417 = vld [vmem:[#allocation4] sm:$0xff]
        %vm418 = vcmp.gt.f32.partialorder %v400, %v417
        %v419 = vld [vmem:[#allocation5] sm:$0xff]
        %v420 = vsel %vm418, %v416, %v419
        %421 = vst.msk [vmem:[#allocation5] sm:$0xff] %vm381, %v420
        %v422 = vld [vmem:[#allocation4] sm:$0xff]
        %v423 = vmax.f32 %v400, %v422
        %424 = vst.msk [vmem:[#allocation4] sm:$0xff] %vm381, %v423
        %p425 = scmp.eq.s32.totalorder %s21, 3
        // Predicated region
        $region49: #{tpu_custom_call.1} parent=35 // pred_check
          %p426 = pneg %p425
        $region50: #{tpu_custom_call.1} parent=35 // pred_check_branch
          %428 = sbr.rel (%p426) target = $region52
        $region51: #{tpu_custom_call.1} parent=35 // pred_region
          %v429 = vld [vmem:[%s2] sm:$0xff]
          %vm430 = vcmp.eq.f32.partialorder %v429, 0.0
          %v431 = vld [vmem:[#allocation3] sm:$0xff]
          %v432 = vld [vmem:[#allocation5] sm:$0xff]
          %v433 = vsel %vm430, %v431, %v432
          %434 = vst.msk [vmem:[%s4] sm:$0xff] %vm381, %v433
        $region52: #{tpu_custom_call.1} parent=35 // pred_fallthru
          _
        // Predicated region
        $region53: #{tpu_custom_call.1} parent=35 // pred_check
          %p435 = pneg %p128
        $region54: #{tpu_custom_call.1} parent=35 // pred_check_branch
          %437 = sbr.rel (%p435) target = $region56
        $region55: #{tpu_custom_call.1} parent=35 // pred_region
          _
        $region56: #{tpu_custom_call.1} parent=35 // pred_fallthru
          _
        // Predicated region
        $region57: #{tpu_custom_call.1} parent=35 // pred_check
          %p438 = pneg %p128
        $region58: #{tpu_custom_call.1} parent=35 // pred_check_branch
          %440 = sbr.rel (%p438) target = $region60
        $region59: #{tpu_custom_call.1} parent=35 // pred_region
          _
        $region60: #{tpu_custom_call.1} parent=35 // pred_fallthru
          _
      $region36: #{tpu_custom_call.1} parent=5 // pred_fallthru
        _
      %p441 = scmp.le.s32.totalorder 2, %s16
      // Predicated region
      $region61: #{tpu_custom_call.1} parent=5 // pred_check
        %p442 = pneg %p441
      $region62: #{tpu_custom_call.1} parent=5 // pred_check_branch
        %444 = sbr.rel (%p442) target = $region64
      $region63: #{tpu_custom_call.1} parent=5 // pred_region
        %s445 = ssub.s32 %s16, 2
      $region64: #{tpu_custom_call.1} parent=5 // pred_fallthru
        _
    $region6: #{tpu_custom_call.1} parent=1 // loop_footer
      %s20 = sadd.s32 1, %s16
    $region7: #{tpu_custom_call.1} parent=1 // loop_footer_branch
      %15 = sbr.rel target = $region3
    $region8: #{tpu_custom_call.1} parent=1 // loop_exit
      _
    %446 = vsyncpa [#allocation7], 1
    %s447 = scalar_lea.sflag [#allocation7], 1
    %448 = vsyncpa %s447, 1
    %449 = vsyncpa [#allocation9], 1
    %s450 = scalar_lea.sflag [#allocation9], 1
    %451 = vsyncpa %s450, 1

</llo_original>
